<compile_context>
chip_gen: v7x
topology: tpu7x:2x2x1
jax: 0.10.0
libtpu: 0.0.40
codegen_flags: <defaults>
</compile_context>

<pallas_src>
import jax
import jax.numpy as jnp
from jax.experimental import pallas as pl
from jax.experimental.pallas import tpu as pltpu

_SQRT_2_OVER_PI = 0.7978845608028654


def _gelu_tanh_f32(x):
    # torch GELU(approximate='tanh'); reassociated to compute x*x once.
    x2 = x * x
    inner = _SQRT_2_OVER_PI * x * (1.0 + 0.044715 * x2)
    return 0.5 * x * (1.0 + jnp.tanh(inner))


# -------------------- kernel --------------------
def ffn_kernel(x_ref, w1_ref, b1_ref, w2_ref, b2_ref, out_ref, acc_ref):
    j = pl.program_id(1)                       # reduction step over the hidden (4D) dim

    @pl.when(j == 0)
    def _():
        acc_ref[...] = jnp.zeros_like(acc_ref)

    # first matmul tile: (tm, D) @ (D, tf) -> f32 accumulation on the MXU
    h = jnp.dot(x_ref[...], w1_ref[...], preferred_element_type=jnp.float32)
    h = h + b1_ref[...].astype(jnp.float32)
    h = _gelu_tanh_f32(h)

    # second matmul tile: (tm, tf) @ (tf, D); accumulate f32, feed MXU bf16 operands
    acc_ref[...] += jnp.dot(h.astype(w2_ref.dtype), w2_ref[...],
                            preferred_element_type=jnp.float32)

    @pl.when(j == pl.num_programs(1) - 1)
    def _():
        out_ref[...] = (acc_ref[...] + b2_ref[...].astype(jnp.float32)).astype(out_ref.dtype)


# -------------------- VMEM / tiling model --------------------
def _vmem_capacity_bytes():
    try:
        cap = pltpu.get_tpu_info().vmem_capacity_bytes
        if cap:
            return int(cap)
    except Exception:
        pass
    return 64 * 1024 * 1024                    # conservative (v7x per-TC)


def _footprint_bytes(tm, tf, D, Dff, xb, wb, ob):
    # BlockSpec inputs/outputs are double-buffered by default.
    x_b = 2 * tm * D * xb
    w1_b = 2 * D * tf * wb
    w2_b = 2 * tf * D * wb
    bias_b = 2 * (tf + D) * wb
    out_b = 2 * tm * D * ob
    acc_b = tm * D * 4                         # persistent f32 accumulator
    h_b = tm * tf * 4                          # f32 GELU temp
    return x_b + w1_b + w2_b + bias_b + out_b + acc_b + h_b


def _select_tiles(Mp, D, Dff, budget, xb, wb, ob):
    # Hidden-dim tile candidates, largest first; full Dff first = weight-resident path.
    tf_cands = [Dff]
    for t in (1024, 512, 256, 128):
        if t < Dff and Dff % t == 0:
            tf_cands.append(t)

    # Row tile candidates (largest first). At large M keep >= 2 row tiles so both
    # v7x TensorCores have work; tiny shapes collapse to a single block.
    tm_cands = [t for t in (1024, 512, 256, 128, 64, 32, 16, 8)
                if t <= Mp and Mp % t == 0]
    if not tm_cands:
        tm_cands = [Mp]
    if Mp >= 512:
        capped = [t for t in tm_cands if t <= Mp // 2]
        if capped:
            tm_cands = capped

    for tm in tm_cands:
        for tf in tf_cands:
            if _footprint_bytes(tm, tf, D, Dff, xb, wb, ob) <= budget:
                return tm, tf
    return tm_cands[-1], tf_cands[-1]


# -------------------- wrapper --------------------
def feed_forward(x, w1, b1, w2, b2, *, tm=None, tf=None):
    """y = GELU(x @ w1 + b1) @ w2 + b2, x: (..., D), w1: (D, 4D), w2: (4D, D)."""
    orig_shape = x.shape
    D = orig_shape[-1]
    Dff = w1.shape[1]
    b1 = b1.reshape(1, Dff)
    b2 = b2.reshape(1, D)

    x2 = x.reshape(-1, D)
    M = x2.shape[0]
    Mp = ((M + 7) // 8) * 8                    # pad rows to a sublane multiple
    if Mp != M:
        # TODO(synk): handle the ragged last row tile with a masked store instead
        # of a wrapper-side jnp.pad (extra HBM pass) for very large M.
        x2 = jnp.pad(x2, ((0, Mp - M), (0, 0)))

    xb = x.dtype.itemsize
    wb = w1.dtype.itemsize
    ob = x.dtype.itemsize

    vmem_cap = _vmem_capacity_bytes()
    budget = int(vmem_cap * 0.75)              # leave headroom for compiler scratch

    if tm is None or tf is None:
        tm_sel, tf_sel = _select_tiles(Mp, D, Dff, budget, xb, wb, ob)
        tm = tm or tm_sel
        tf = tf or tf_sel
    grid = (Mp // tm, Dff // tf)

    footprint = _footprint_bytes(tm, tf, D, Dff, xb, wb, ob)
    vmem_limit = max(32 * 1024 * 1024, footprint + 8 * 1024 * 1024)
    vmem_limit = min(vmem_limit, int(vmem_cap * 0.9))

    cost = pl.CostEstimate(
        flops=4 * Mp * D * Dff,                               # two GEMMs
        transcendentals=Mp * Dff,                             # tanh per hidden element
        bytes_accessed=int(Mp * D * (xb + ob)
                           + (Mp // tm) * (2 * D * Dff + Dff + D) * wb),
    )

    out = pl.pallas_call(
        ffn_kernel,
        out_shape=jax.ShapeDtypeStruct((Mp, D), x.dtype),
        grid=grid,
        in_specs=[
            pl.BlockSpec((tm, D), lambda i, j: (i, 0)),   # x row tile (reused over j)
            pl.BlockSpec((D, tf), lambda i, j: (0, j)),   # W1 N-tile (resident if tf==Dff)
            pl.BlockSpec((1, tf), lambda i, j: (0, j)),   # b1 tile
            pl.BlockSpec((tf, D), lambda i, j: (j, 0)),   # W2 K-tile (resident if tf==Dff)
            pl.BlockSpec((1, D), lambda i, j: (0, 0)),    # b2 (constant block)
        ],
        out_specs=pl.BlockSpec((tm, D), lambda i, j: (i, 0)),
        scratch_shapes=[pltpu.VMEM((tm, D), jnp.float32)],    # f32 accumulator
        compiler_params=pltpu.CompilerParams(
            dimension_semantics=("parallel", "arbitrary"),
            vmem_limit_bytes=int(vmem_limit)),
        cost_estimate=cost,
    )(x2, w1, b1, w2, b2)

    if Mp != M:
        out = out[:M]
    return out.reshape(orig_shape)


# -------------------- deterministic init --------------------
def init_ffn_params(emb_dim, key, dtype=jnp.bfloat16):
    d_ff = 4 * emb_dim
    k1, k2 = jax.random.split(key)
    return {
        "w1": (0.02 * jax.random.normal(k1, (emb_dim, d_ff), jnp.float32)).astype(dtype),
        "b1": jnp.zeros((1, d_ff), dtype),
        "w2": (0.02 * jax.random.normal(k2, (d_ff, emb_dim), jnp.float32)).astype(dtype),
        "b2": jnp.zeros((1, emb_dim), dtype),
    }


if __name__ == "__main__":
    cfg = {"emb_dim": 128}                     # lane-dense last dim (multiple of 128)
    B, T, D = 2, 8, cfg["emb_dim"]

    key = jax.random.PRNGKey(0)
    pkey, xkey = jax.random.split(key)
    params = init_ffn_params(D, pkey, dtype=jnp.bfloat16)
    x = jax.random.normal(xkey, (B, T, D), jnp.float32).astype(jnp.bfloat16)

    y = feed_forward(x, params["w1"], params["b1"], params["w2"], params["b2"])
    jax.block_until_ready(y)
    assert y.shape == (B, T, D), y.shape

    # reference (f32 math on the same bf16-quantized values)
    xf = x.astype(jnp.float32)
    h_ref = xf @ params["w1"].astype(jnp.float32) + params["b1"].astype(jnp.float32)
    h_ref = 0.5 * h_ref * (1.0 + jnp.tanh(_SQRT_2_OVER_PI
                                          * (h_ref + 0.044715 * h_ref ** 3)))
    y_ref = h_ref @ params["w2"].astype(jnp.float32) + params["b2"].astype(jnp.float32)
    err = jnp.max(jnp.abs(y.astype(jnp.float32) - y_ref.reshape(B, T, D)))
    assert float(err) < 5e-2, float(err)

    print("KERNEL_OK")
</pallas_src>

<mosaic_0001>
module attributes {stable_mosaic.version = 11 : i64} {
  func.func @ffn_kernel(%arg0: i32, %arg1: i32, %arg2: memref<16x128xbf16, #tpu.memory_space<vmem>>, %arg3: memref<128x512xbf16, #tpu.memory_space<vmem>>, %arg4: memref<1x512xbf16, #tpu.memory_space<vmem>>, %arg5: memref<512x128xbf16, #tpu.memory_space<vmem>>, %arg6: memref<1x128xbf16, #tpu.memory_space<vmem>>, %arg7: memref<16x128xbf16, #tpu.memory_space<vmem>>, %arg8: memref<16x128xf32, #tpu.memory_space<vmem>>) attributes {dimension_semantics = [#tpu.dimension_semantics<parallel>, #tpu.dimension_semantics<arbitrary>], iteration_bounds = array<i64: 1, 1>, scalar_prefetch = 0 : i64, scratch_operands = 1 : i64, tpu.core_type = #tpu.core_type<tc>, window_params = [{transform_indices = @transform_0, window_bounds = array<i64: 16, 128>}, {transform_indices = @transform_1, window_bounds = array<i64: 128, 512>}, {transform_indices = @transform_2, window_bounds = array<i64: 1, 512>}, {transform_indices = @transform_3, window_bounds = array<i64: 512, 128>}, {pipeline_mode = #tpu.pipeline_mode<synchronous>, transform_indices = @transform_4, window_bounds = array<i64: 1, 128>}, {transform_indices = @transform_5, window_bounds = array<i64: 16, 128>}]} {
    %c0_i32 = arith.constant 0 : i32
    %0 = arith.cmpi eq, %arg1, %c0_i32 : i32
    %1 = arith.extui %0 : i1 to i32
    %c0_i32_0 = arith.constant 0 : i32
    %2 = arith.cmpi ne, %1, %c0_i32_0 : i32
    scf.if %2 {
      %cst_20 = arith.constant 0.000000e+00 : f32
      %33 = vector.broadcast %cst_20 : f32 to vector<16x128xf32>
      %c0_21 = arith.constant 0 : index
      %c0_22 = arith.constant 0 : index
      %34 = vector.load %arg8[%c0_21, %c0_22] : memref<16x128xf32, #tpu.memory_space<vmem>>, vector<16x128xf32>
      tpu.vector_store %arg8[%c0_21, %c0_22], %33 {strides = array<i32>} : memref<16x128xf32, #tpu.memory_space<vmem>>, vector<16x128xf32>,
    } else {
    }
    %c0 = arith.constant 0 : index
    %c0_1 = arith.constant 0 : index
    %3 = vector.load %arg2[%c0, %c0_1] : memref<16x128xbf16, #tpu.memory_space<vmem>>, vector<16x128xbf16>
    %c0_2 = arith.constant 0 : index
    %c0_3 = arith.constant 0 : index
    %4 = vector.load %arg3[%c0_2, %c0_3] : memref<128x512xbf16, #tpu.memory_space<vmem>>, vector<128x512xbf16>
    %cst = arith.constant dense<0.000000e+00> : vector<16x512xf32>
    %5 = tpu.matmul %3, %4, %cst {dimension_numbers = #tpu.dot_dimension_numbers<[1], [0], [0], [1], [0, 0, 1, 1], [], []>} : vector<16x128xbf16>, vector<128x512xbf16>, vector<16x512xf32> -> vector<16x512xf32>
    %c0_4 = arith.constant 0 : index
    %c0_5 = arith.constant 0 : index
    %6 = vector.load %arg4[%c0_4, %c0_5] : memref<1x512xbf16, #tpu.memory_space<vmem>>, vector<1x512xbf16>
    %7 = arith.extf %6 : vector<1x512xbf16> to vector<1x512xf32>
    %8 = vector.broadcast %7 : vector<1x512xf32> to vector<16x512xf32>
    %9 = arith.addf %5, %8 : vector<16x512xf32>
    %10 = arith.mulf %9, %9 : vector<16x512xf32>
    %cst_6 = arith.constant 0.797884583 : f32
    %11 = vector.broadcast %cst_6 : f32 to vector<16x512xf32>
    %12 = arith.mulf %11, %9 : vector<16x512xf32>
    %cst_7 = arith.constant 4.471500e-02 : f32
    %13 = vector.broadcast %cst_7 : f32 to vector<16x512xf32>
    %14 = arith.mulf %13, %10 : vector<16x512xf32>
    %cst_8 = arith.constant 1.000000e+00 : f32
    %15 = vector.broadcast %cst_8 : f32 to vector<16x512xf32>
    %16 = arith.addf %15, %14 : vector<16x512xf32>
    %17 = arith.mulf %12, %16 : vector<16x512xf32>
    %cst_9 = arith.constant 5.000000e-01 : f32
    %18 = vector.broadcast %cst_9 : f32 to vector<16x512xf32>
    %19 = arith.mulf %18, %9 : vector<16x512xf32>
    %20 = math.tanh %17 : vector<16x512xf32>
    %cst_10 = arith.constant 1.000000e+00 : f32
    %21 = vector.broadcast %cst_10 : f32 to vector<16x512xf32>
    %22 = arith.addf %21, %20 : vector<16x512xf32>
    %23 = arith.mulf %19, %22 : vector<16x512xf32>
    %c0_11 = arith.constant 0 : index
    %c0_12 = arith.constant 0 : index
    %24 = vector.load %arg8[%c0_11, %c0_12] : memref<16x128xf32, #tpu.memory_space<vmem>>, vector<16x128xf32>
    %25 = arith.truncf %23 : vector<16x512xf32> to vector<16x512xbf16>
    %c0_13 = arith.constant 0 : index
    %c0_14 = arith.constant 0 : index
    %26 = vector.load %arg5[%c0_13, %c0_14] : memref<512x128xbf16, #tpu.memory_space<vmem>>, vector<512x128xbf16>
    %cst_15 = arith.constant dense<0.000000e+00> : vector<16x128xf32>
    %27 = tpu.matmul %25, %26, %cst_15 {dimension_numbers = #tpu.dot_dimension_numbers<[1], [0], [0], [1], [0, 0, 1, 1], [], []>} : vector<16x512xbf16>, vector<512x128xbf16>, vector<16x128xf32> -> vector<16x128xf32>
    %28 = arith.addf %24, %27 : vector<16x128xf32>
    %c0_16 = arith.constant 0 : index
    %c0_17 = arith.constant 0 : index
    %29 = vector.load %arg8[%c0_16, %c0_17] : memref<16x128xf32, #tpu.memory_space<vmem>>, vector<16x128xf32>
    tpu.vector_store %arg8[%c0_16, %c0_17], %28 {strides = array<i32>} : memref<16x128xf32, #tpu.memory_space<vmem>>, vector<16x128xf32>,
    %c0_i32_18 = arith.constant 0 : i32
    %30 = arith.cmpi eq, %arg1, %c0_i32_18 : i32
    %31 = arith.extui %30 : i1 to i32
    %c0_i32_19 = arith.constant 0 : i32
    %32 = arith.cmpi ne, %31, %c0_i32_19 : i32
    scf.if %32 {
      %c0_20 = arith.constant 0 : index
      %c0_21 = arith.constant 0 : index
      %33 = vector.load %arg8[%c0_20, %c0_21] : memref<16x128xf32, #tpu.memory_space<vmem>>, vector<16x128xf32>
      %c0_22 = arith.constant 0 : index
      %c0_23 = arith.constant 0 : index
      %34 = vector.load %arg6[%c0_22, %c0_23] : memref<1x128xbf16, #tpu.memory_space<vmem>>, vector<1x128xbf16>
      %35 = arith.extf %34 : vector<1x128xbf16> to vector<1x128xf32>
      %36 = vector.broadcast %35 : vector<1x128xf32> to vector<16x128xf32>
      %37 = arith.addf %33, %36 : vector<16x128xf32>
      %38 = arith.truncf %37 : vector<16x128xf32> to vector<16x128xbf16>
      %c0_24 = arith.constant 0 : index
      %c0_25 = arith.constant 0 : index
      %39 = vector.load %arg7[%c0_24, %c0_25] : memref<16x128xbf16, #tpu.memory_space<vmem>>, vector<16x128xbf16>
      tpu.vector_store %arg7[%c0_24, %c0_25], %38 {strides = array<i32>} : memref<16x128xbf16, #tpu.memory_space<vmem>>, vector<16x128xbf16>,
    } else {
    }
    return
  }
  func.func @transform_0(%arg0: i32, %arg1: i32) -> (i32, i32) {
    %c0_i32 = arith.constant 0 : i32
    %c0_i32_0 = arith.constant 0 : i32
    return %arg0, %c0_i32 : i32, i32
  }
  func.func @transform_1(%arg0: i32, %arg1: i32) -> (i32, i32) {
    %c0_i32 = arith.constant 0 : i32
    %c0_i32_0 = arith.constant 0 : i32
    return %c0_i32, %arg1 : i32, i32
  }
  func.func @transform_2(%arg0: i32, %arg1: i32) -> (i32, i32) {
    %c0_i32 = arith.constant 0 : i32
    %c0_i32_0 = arith.constant 0 : i32
    return %c0_i32, %arg1 : i32, i32
  }
  func.func @transform_3(%arg0: i32, %arg1: i32) -> (i32, i32) {
    %c0_i32 = arith.constant 0 : i32
    %c0_i32_0 = arith.constant 0 : i32
    return %arg1, %c0_i32 : i32, i32
  }
  func.func @transform_4(%arg0: i32, %arg1: i32) -> (i32, i32) {
    %c0_i32 = arith.constant 0 : i32
    %c0_i32_0 = arith.constant 0 : i32
    %c0_i32_1 = arith.constant 0 : i32
    return %c0_i32, %c0_i32_0 : i32, i32
  }
  func.func @transform_5(%arg0: i32, %arg1: i32) -> (i32, i32) {
    %c0_i32 = arith.constant 0 : i32
    %c0_i32_0 = arith.constant 0 : i32
    return %arg0, %c0_i32 : i32, i32
  }
}

</mosaic_0001>

<llo_original>
// kernel: tpu_custom_call.1
$region0: #{tpu_custom_call.1}
  #allocation0 [shape = 'u32[]', space=smem, size = 0x4, offset = 0x4, fixed_abs, tag = 'smem constant byte address 0x4 - core index']
  #allocation1 [shape = 'u32[144,128]{1,0:T(1,128)}', space=vmem, size = 0x12000, scoped, tag = 'internal scratch']
  #allocation2 [shape = 'f32[16,128]{1,0:T(8,128)}', space=vmem, size = 0x2000, scoped, tag = 'scratch operand']
  %s0 = inlined_call_operand.hbm [shape: bf16[16,128], index: 0, kind: input, shape index: {}]
  %s1 = inlined_call_operand.hbm [shape: bf16[128,512], index: 1, kind: input, shape index: {}]
  %s2 = inlined_call_operand.vmem [shape: bf16[1,512], index: 2, kind: input, shape index: {}]
  %s3 = inlined_call_operand.hbm [shape: bf16[512,128], index: 3, kind: input, shape index: {}]
  %s4 = inlined_call_operand.vmem [shape: bf16[1,128], index: 4, kind: input, shape index: {}]
  %s5 = inlined_call_operand.hbm [shape: bf16[16,128], index: 5, kind: output, shape index: {}]
  %s6 = sld [smem:[#allocation0]]
  $region50: #{tpu_custom_call.1} parent=0
    _
  %s8 = ssub.s32 1, %s6
  %s9 = scalar_select 0, %s8, %s6
  $region1: #{tpu_custom_call.1} parent=0
    #allocation3 [shape = 'u8[4096]{0}', space=vmem, size = 0x1000, scoped, tag = 'input window, operand 0, single buffered']
    #allocation4 [shape = 's32[1]{0}', space=sflag, size = 0x4, scoped, tag = 'scoped memory for tpu_custom_call.1']
    #allocation5 [shape = 's32[1]{0}', space=sflag, size = 0x4, scoped, tag = 'scoped memory for tpu_custom_call.1']
    #allocation6 [shape = 'u8[131072]{0}', space=vmem, size = 0x20000, scoped, tag = 'input window, operand 1, single buffered']
    #allocation7 [shape = 's32[1]{0}', space=sflag, size = 0x4, scoped, tag = 'scoped memory for tpu_custom_call.1']
    #allocation8 [shape = 'u8[131072]{0}', space=vmem, size = 0x20000, scoped, tag = 'input window, operand 3, single buffered']
    #allocation9 [shape = 'u8[4096]{0}', space=vmem, size = 0x1000, scoped, tag = 'output window, operand 0, single buffered']
    %10 = vsyncpa [#allocation4], 0
    %11 = vsyncpa [#allocation7], 0
    %12 = vsyncpa [#allocation5], 0
    // Predicated region
    $region2: #{tpu_custom_call.1} parent=1 // pred_check
      _
    $region3: #{tpu_custom_call.1} parent=1 // pred_check_branch
      %14 = sbr.rel (0) target = $region5
    $region4: #{tpu_custom_call.1} parent=1 // pred_region
      %s16 = ssub.s32 128, 128
      %17 = vsyncadd [#allocation4], %s16
      %s18 = sshll.u32 [#allocation3], 4
      %s19 = int_to_ptr.vmem [resolvable:$true] %s18
      %24 = dma.hbm_to_vmem [thread:$0]  %s0, 128, %s19, [#allocation4], 64, 64, 4
    $region5: #{tpu_custom_call.1} parent=1 // pred_fallthru
      _
    // Predicated region
    $region6: #{tpu_custom_call.1} parent=1 // pred_check
      _
    $region7: #{tpu_custom_call.1} parent=1 // pred_check_branch
      %26 = sbr.rel (0) target = $region9
    $region8: #{tpu_custom_call.1} parent=1 // pred_region
      %s28 = ssub.s32 4096, 4096
      %29 = vsyncadd [#allocation7], %s28
      %s30 = sshll.u32 [#allocation6], 4
      %s31 = int_to_ptr.vmem [resolvable:$true] %s30
      %36 = dma.hbm_to_vmem [thread:$0]  %s1, 4096, %s31, [#allocation7], 256, 256, 16
    $region9: #{tpu_custom_call.1} parent=1 // pred_fallthru
      _
    // Predicated region
    $region10: #{tpu_custom_call.1} parent=1 // pred_check
      _
    $region11: #{tpu_custom_call.1} parent=1 // pred_check_branch
      %38 = sbr.rel (0) target = $region13
    $region12: #{tpu_custom_call.1} parent=1 // pred_region
      _
    $region13: #{tpu_custom_call.1} parent=1 // pred_fallthru
      _
    // Predicated region
    $region14: #{tpu_custom_call.1} parent=1 // pred_check
      _
    $region15: #{tpu_custom_call.1} parent=1 // pred_check_branch
      %40 = sbr.rel (0) target = $region17
    $region16: #{tpu_custom_call.1} parent=1 // pred_region
      %s42 = ssub.s32 4096, 4096
      %43 = vsyncadd [#allocation7], %s42
      %s44 = sshll.u32 [#allocation8], 4
      %s45 = int_to_ptr.vmem [resolvable:$true] %s44
      %50 = dma.hbm_to_vmem [thread:$0]  %s3, 4096, %s45, [#allocation7], 64, 64, 4
    $region17: #{tpu_custom_call.1} parent=1 // pred_fallthru
      _
    // Predicated region
    $region18: #{tpu_custom_call.1} parent=1 // pred_check
      _
    $region19: #{tpu_custom_call.1} parent=1 // pred_check_branch
      %52 = sbr.rel (0) target = $region21
    $region20: #{tpu_custom_call.1} parent=1 // pred_region
      _
    $region21: #{tpu_custom_call.1} parent=1 // pred_fallthru
      _
    // Predicated region
    $region22: #{tpu_custom_call.1} parent=1 // pred_check
      _
    $region23: #{tpu_custom_call.1} parent=1 // pred_check_branch
      %54 = sbr.rel (0) target = $region25
    $region24: #{tpu_custom_call.1} parent=1 // pred_region
      %55 = dma.done [#allocation4], 128
    $region25: #{tpu_custom_call.1} parent=1 // pred_fallthru
      _
    // Predicated region
    $region26: #{tpu_custom_call.1} parent=1 // pred_check
      _
    $region27: #{tpu_custom_call.1} parent=1 // pred_check_branch
      %57 = sbr.rel (0) target = $region29
    $region28: #{tpu_custom_call.1} parent=1 // pred_region
      %58 = dma.done [#allocation7], 4096
    $region29: #{tpu_custom_call.1} parent=1 // pred_fallthru
      _
    // Predicated region
    $region30: #{tpu_custom_call.1} parent=1 // pred_check
      _
    $region31: #{tpu_custom_call.1} parent=1 // pred_check_branch
      %60 = sbr.rel (0) target = $region33
    $region32: #{tpu_custom_call.1} parent=1 // pred_region
      %61 = dma.done [#allocation7], 4096
    $region33: #{tpu_custom_call.1} parent=1 // pred_fallthru
      _
    %p63 = scmp.eq.s32.totalorder 0, 0
    // Predicated region
    $region34: #{tpu_custom_call.1} parent=1 // pred_check
      %p64 = pneg %p63
    $region35: #{tpu_custom_call.1} parent=1 // pred_check_branch
      %66 = sbr.rel (%p64) target = $region37
    $region36: #{tpu_custom_call.1} parent=1 // pred_region
      %67 = vst [vmem:[#allocation2] sm:$0xff] 0.0
      %68 = vst [vmem:[#allocation2 + $0x8] sm:$0xff] 0.0
    $region37: #{tpu_custom_call.1} parent=1 // pred_fallthru
      _
    %v69 = vld [vmem:[#allocation3] sm:$0xf]
    %v70 = vld [vmem:[#allocation3 + $0x4] sm:$0xf]
    %v71 = vld [vmem:[#allocation6] sm:$0xff]
    %v72 = vld [vmem:[#allocation6 + $0x8] sm:$0xff]
    %v73 = vld [vmem:[#allocation6 + $0x10] sm:$0xff]
    %v74 = vld [vmem:[#allocation6 + $0x18] sm:$0xff]
    %v75 = vld [vmem:[#allocation6 + $0x20] sm:$0xff]
    %v76 = vld [vmem:[#allocation6 + $0x28] sm:$0xff]
    %v77 = vld [vmem:[#allocation6 + $0x30] sm:$0xff]
    %v78 = vld [vmem:[#allocation6 + $0x38] sm:$0xff]
    %v79 = vld [vmem:[#allocation6 + $0x40] sm:$0xff]
    %v80 = vld [vmem:[#allocation6 + $0x48] sm:$0xff]
    %v81 = vld [vmem:[#allocation6 + $0x50] sm:$0xff]
    %v82 = vld [vmem:[#allocation6 + $0x58] sm:$0xff]
    %v83 = vld [vmem:[#allocation6 + $0x60] sm:$0xff]
    %v84 = vld [vmem:[#allocation6 + $0x68] sm:$0xff]
    %v85 = vld [vmem:[#allocation6 + $0x70] sm:$0xff]
    %v86 = vld [vmem:[#allocation6 + $0x78] sm:$0xff]
    %v87 = vld [vmem:[#allocation6 + $0x80] sm:$0xff]
    %v88 = vld [vmem:[#allocation6 + $0x88] sm:$0xff]
    %v89 = vld [vmem:[#allocation6 + $0x90] sm:$0xff]
    %v90 = vld [vmem:[#allocation6 + $0x98] sm:$0xff]
    %v91 = vld [vmem:[#allocation6 + $0xa0] sm:$0xff]
    %v92 = vld [vmem:[#allocation6 + $0xa8] sm:$0xff]
    %v93 = vld [vmem:[#allocation6 + $0xb0] sm:$0xff]
    %v94 = vld [vmem:[#allocation6 + $0xb8] sm:$0xff]
    %v95 = vld [vmem:[#allocation6 + $0xc0] sm:$0xff]
    %v96 = vld [vmem:[#allocation6 + $0xc8] sm:$0xff]
    %v97 = vld [vmem:[#allocation6 + $0xd0] sm:$0xff]
    %v98 = vld [vmem:[#allocation6 + $0xd8] sm:$0xff]
    %v99 = vld [vmem:[#allocation6 + $0xe0] sm:$0xff]
    %v100 = vld [vmem:[#allocation6 + $0xe8] sm:$0xff]
    %v101 = vld [vmem:[#allocation6 + $0xf0] sm:$0xff]
    %v102 = vld [vmem:[#allocation6 + $0xf8] sm:$0xff]
    %v103 = vld [vmem:[%s2] sm:$0xf]
    %v104 = vunpack.c.l.bf16 %v103
    %v106 = vlaneseq
    %v107 = vshrl.u32 %v106, 7
    %v108 = vsub.s32 0, %v107
    %v109 = vrot.slane %v104, %v108
    %v110 = vlaneseq
    %v111 = vshrl.u32 %v110, 7
    %v112 = vsub.s32 2, %v111
    %v113 = vrot.slane %v104, %v112
    %v114 = vlaneseq
    %v115 = vshrl.u32 %v114, 7
    %v116 = vsub.s32 4, %v115
    %v117 = vrot.slane %v104, %v116
    %v118 = vlaneseq
    %v119 = vshrl.u32 %v118, 7
    %v120 = vsub.s32 6, %v119
    %v121 = vrot.slane %v104, %v120
    %v126 = vlaneseq
    %v127 = vshrl.u32 %v126, 7
    %v128 = vsub.s32 0, %v127
    %v129 = vrot.slane %v109, %v128
    %v130 = vlaneseq
    %v131 = vshrl.u32 %v130, 7
    %v132 = vsub.s32 0, %v131
    %v133 = vrot.slane %v113, %v132
    %v134 = vlaneseq
    %v135 = vshrl.u32 %v134, 7
    %v136 = vsub.s32 0, %v135
    %v137 = vrot.slane %v117, %v136
    %v138 = vlaneseq
    %v139 = vshrl.u32 %v138, 7
    %v140 = vsub.s32 0, %v139
    %v141 = vrot.slane %v121, %v140
    %v144 = vunpack.c.l.b16 %v69
    %v145 = vunpack.c.l.b16 %v70
    %v146 = vpack.c.b16 %v145, %v144
    %v180 = vunpack.c.l.b16 %v71
    %v181 = vunpack.c.h.b16 %v71
    %v182 = vunpack.c.l.b16 %v72
    %v183 = vunpack.c.h.b16 %v72
    %v184 = vunpack.c.l.b16 %v73
    %v185 = vunpack.c.h.b16 %v73
    %v186 = vunpack.c.l.b16 %v74
    %v187 = vunpack.c.h.b16 %v74
    %v188 = vunpack.c.l.b16 %v75
    %v189 = vunpack.c.h.b16 %v75
    %v190 = vunpack.c.l.b16 %v76
    %v191 = vunpack.c.h.b16 %v76
    %v192 = vunpack.c.l.b16 %v77
    %v193 = vunpack.c.h.b16 %v77
    %v194 = vunpack.c.l.b16 %v78
    %v195 = vunpack.c.h.b16 %v78
    %v196 = vunpack.c.l.b16 %v79
    %v197 = vunpack.c.h.b16 %v79
    %v198 = vunpack.c.l.b16 %v80
    %v199 = vunpack.c.h.b16 %v80
    %v200 = vunpack.c.l.b16 %v81
    %v201 = vunpack.c.h.b16 %v81
    %v202 = vunpack.c.l.b16 %v82
    %v203 = vunpack.c.h.b16 %v82
    %v204 = vunpack.c.l.b16 %v83
    %v205 = vunpack.c.h.b16 %v83
    %v206 = vunpack.c.l.b16 %v84
    %v207 = vunpack.c.h.b16 %v84
    %v208 = vunpack.c.l.b16 %v85
    %v209 = vunpack.c.h.b16 %v85
    %v210 = vunpack.c.l.b16 %v86
    %v211 = vunpack.c.h.b16 %v86
    %v212 = vunpack.c.l.b16 %v87
    %v213 = vunpack.c.h.b16 %v87
    %v214 = vunpack.c.l.b16 %v88
    %v215 = vunpack.c.h.b16 %v88
    %v216 = vunpack.c.l.b16 %v89
    %v217 = vunpack.c.h.b16 %v89
    %v218 = vunpack.c.l.b16 %v90
    %v219 = vunpack.c.h.b16 %v90
    %v220 = vunpack.c.l.b16 %v91
    %v221 = vunpack.c.h.b16 %v91
    %v222 = vunpack.c.l.b16 %v92
    %v223 = vunpack.c.h.b16 %v92
    %v224 = vunpack.c.l.b16 %v93
    %v225 = vunpack.c.h.b16 %v93
    %v226 = vunpack.c.l.b16 %v94
    %v227 = vunpack.c.h.b16 %v94
    %v228 = vunpack.c.l.b16 %v95
    %v229 = vunpack.c.h.b16 %v95
    %v230 = vunpack.c.l.b16 %v96
    %v231 = vunpack.c.h.b16 %v96
    %v232 = vunpack.c.l.b16 %v97
    %v233 = vunpack.c.h.b16 %v97
    %v234 = vunpack.c.l.b16 %v98
    %v235 = vunpack.c.h.b16 %v98
    %v236 = vunpack.c.l.b16 %v99
    %v237 = vunpack.c.h.b16 %v99
    %v238 = vunpack.c.l.b16 %v100
    %v239 = vunpack.c.h.b16 %v100
    %v240 = vunpack.c.l.b16 %v101
    %v241 = vunpack.c.h.b16 %v101
    %v242 = vunpack.c.l.b16 %v102
    %v243 = vunpack.c.h.b16 %v102
    %v244 = vpack.c.b16 %v184, %v180
    %v245 = vpack.c.b16 %v185, %v181
    %v246 = vpack.c.b16 %v186, %v182
    %v247 = vpack.c.b16 %v187, %v183
    %v248 = vpack.c.b16 %v192, %v188
    %v249 = vpack.c.b16 %v193, %v189
    %v250 = vpack.c.b16 %v194, %v190
    %v251 = vpack.c.b16 %v195, %v191
    %v252 = vpack.c.b16 %v200, %v196
    %v253 = vpack.c.b16 %v201, %v197
    %v254 = vpack.c.b16 %v202, %v198
    %v255 = vpack.c.b16 %v203, %v199
    %v256 = vpack.c.b16 %v208, %v204
    %v257 = vpack.c.b16 %v209, %v205
    %v258 = vpack.c.b16 %v210, %v206
    %v259 = vpack.c.b16 %v211, %v207
    %v260 = vpack.c.b16 %v216, %v212
    %v261 = vpack.c.b16 %v217, %v213
    %v262 = vpack.c.b16 %v218, %v214
    %v263 = vpack.c.b16 %v219, %v215
    %v264 = vpack.c.b16 %v224, %v220
    %v265 = vpack.c.b16 %v225, %v221
    %v266 = vpack.c.b16 %v226, %v222
    %v267 = vpack.c.b16 %v227, %v223
    %v268 = vpack.c.b16 %v232, %v228
    %v269 = vpack.c.b16 %v233, %v229
    %v270 = vpack.c.b16 %v234, %v230
    %v271 = vpack.c.b16 %v235, %v231
    %v272 = vpack.c.b16 %v240, %v236
    %v273 = vpack.c.b16 %v241, %v237
    %v274 = vpack.c.b16 %v242, %v238
    %v275 = vpack.c.b16 %v243, %v239
    %308 = vmatprep.subr.bf16.mxu0 %v245
    %309 = vmatpush1.bf16.msra.mxu0 %v244
    %310 = vmatprep.subr.bf16.mxu0 %v249
    %311 = vmatpush1.bf16.msra.mxu0 %v248
    %312 = vmatprep.subr.bf16.mxu0 %v253
    %313 = vmatpush1.bf16.msra.mxu0 %v252
    %314 = vmatprep.subr.bf16.mxu0 %v257
    %315 = vmatpush1.bf16.msra.mxu0 %v256
    %316 = vmatprep.subr.bf16.mxu0 %v261
    %317 = vmatpush1.bf16.msra.mxu0 %v260
    %318 = vmatprep.subr.bf16.mxu0 %v265
    %319 = vmatpush1.bf16.msra.mxu0 %v264
    %320 = vmatprep.subr.bf16.mxu0 %v269
    %321 = vmatpush1.bf16.msra.mxu0 %v268
    %322 = vmatprep.subr.bf16.mxu0 %v273
    %323 = vmatpush1.bf16.msra.mxu0 %v272
    %324 = vmatprep.subr.bf16.mxu0 0
    %325 = vmatpush1.bf16.msra.mxu0 0
    %326 = vmatprep.subr.bf16.mxu0 0
    %327 = vmatpush1.bf16.msra.mxu0 0
    %328 = vmatprep.subr.bf16.mxu0 0
    %329 = vmatpush1.bf16.msra.mxu0 0
    %330 = vmatprep.subr.bf16.mxu0 0
    %331 = vmatpush1.bf16.msra.mxu0 0
    %332 = vmatprep.subr.bf16.mxu0 0
    %333 = vmatpush1.bf16.msra.mxu0 0
    %334 = vmatprep.subr.bf16.mxu0 0
    %335 = vmatpush1.bf16.msra.mxu0 0
    %336 = vmatprep.subr.bf16.mxu0 0
    %337 = vmatpush1.bf16.msra.mxu0 0
    %338 = vmatprep.subr.bf16.mxu0 0
    %339 = vmatpush1.bf16.msra.mxu0 0
    %340 = vmatprep.mubr.bf16.mxu0 0
    %341 = vmatmul.mubr.bf16.gmra.mrb[0].mxu0 %v146
    %v342 = vpop.f32.mrb[0].mxu0
    %v343 = vadd.f32 %v129, %v342
    %v344 = vpop.f32.mrb[0].mxu0
    %v345 = vadd.f32 %v133, %v344
    %v346 = vpop.f32.mrb[0].mxu0
    %v347 = vadd.f32 %v129, %v346
    %v348 = vpop.f32.mrb[0].mxu0
    %v349 = vadd.f32 %v133, %v348
    %350 = vdwg.mxu0
    %351 = vmatprep.subr.bf16.mxu0 %v247
    %352 = vmatpush1.bf16.msra.mxu0 %v246
    %353 = vmatprep.subr.bf16.mxu0 %v251
    %354 = vmatpush1.bf16.msra.mxu0 %v250
    %355 = vmatprep.subr.bf16.mxu0 %v255
    %356 = vmatpush1.bf16.msra.mxu0 %v254
    %357 = vmatprep.subr.bf16.mxu0 %v259
    %358 = vmatpush1.bf16.msra.mxu0 %v258
    %359 = vmatprep.subr.bf16.mxu0 %v263
    %360 = vmatpush1.bf16.msra.mxu0 %v262
    %361 = vmatprep.subr.bf16.mxu0 %v267
    %362 = vmatpush1.bf16.msra.mxu0 %v266
    %363 = vmatprep.subr.bf16.mxu0 %v271
    %364 = vmatpush1.bf16.msra.mxu0 %v270
    %365 = vmatprep.subr.bf16.mxu0 %v275
    %366 = vmatpush1.bf16.msra.mxu0 %v274
    %367 = vmatprep.subr.bf16.mxu0 0
    %368 = vmatpush1.bf16.msra.mxu0 0
    %369 = vmatprep.subr.bf16.mxu0 0
    %370 = vmatpush1.bf16.msra.mxu0 0
    %371 = vmatprep.subr.bf16.mxu0 0
    %372 = vmatpush1.bf16.msra.mxu0 0
    %373 = vmatprep.subr.bf16.mxu0 0
    %374 = vmatpush1.bf16.msra.mxu0 0
    %375 = vmatprep.subr.bf16.mxu0 0
    %376 = vmatpush1.bf16.msra.mxu0 0
    %377 = vmatprep.subr.bf16.mxu0 0
    %378 = vmatpush1.bf16.msra.mxu0 0
    %379 = vmatprep.subr.bf16.mxu0 0
    %380 = vmatpush1.bf16.msra.mxu0 0
    %381 = vmatprep.subr.bf16.mxu0 0
    %382 = vmatpush1.bf16.msra.mxu0 0
    %383 = vmatprep.mubr.bf16.mxu0 0
    %384 = vmatmul.mubr.bf16.gmra.mrb[0].mxu0 %v146
    %v385 = vpop.f32.mrb[0].mxu0
    %v386 = vadd.f32 %v137, %v385
    %v387 = vpop.f32.mrb[0].mxu0
    %v388 = vadd.f32 %v141, %v387
    %v389 = vpop.f32.mrb[0].mxu0
    %v390 = vadd.f32 %v137, %v389
    %v391 = vpop.f32.mrb[0].mxu0
    %v392 = vadd.f32 %v141, %v391
    %393 = vdwg.mxu0
    %v394 = vmul.f32 %v343, %v343
    %v395 = vmul.f32 %v345, %v345
    %v396 = vmul.f32 %v386, %v386
    %v397 = vmul.f32 %v388, %v388
    %v398 = vmul.f32 %v347, %v347
    %v399 = vmul.f32 %v349, %v349
    %v400 = vmul.f32 %v390, %v390
    %v401 = vmul.f32 %v392, %v392
    %v402 = vmul.f32 %v343, 0.7978846
    %v403 = vmul.f32 %v345, 0.7978846
    %v404 = vmul.f32 %v386, 0.7978846
    %v405 = vmul.f32 %v388, 0.7978846
    %v406 = vmul.f32 %v347, 0.7978846
    %v407 = vmul.f32 %v349, 0.7978846
    %v408 = vmul.f32 %v390, 0.7978846
    %v409 = vmul.f32 %v392, 0.7978846
    %v410 = vmul.f32 %v394, 0.044715
    %v411 = vmul.f32 %v395, 0.044715
    %v412 = vmul.f32 %v396, 0.044715
    %v413 = vmul.f32 %v397, 0.044715
    %v414 = vmul.f32 %v398, 0.044715
    %v415 = vmul.f32 %v399, 0.044715
    %v416 = vmul.f32 %v400, 0.044715
    %v417 = vmul.f32 %v401, 0.044715
    %v418 = vadd.f32 %v410, 1.0
    %v419 = vadd.f32 %v411, 1.0
    %v420 = vadd.f32 %v412, 1.0
    %v421 = vadd.f32 %v413, 1.0
    %v422 = vadd.f32 %v414, 1.0
    %v423 = vadd.f32 %v415, 1.0
    %v424 = vadd.f32 %v416, 1.0
    %v425 = vadd.f32 %v417, 1.0
    %v426 = vmul.f32 %v402, %v418
    %v427 = vmul.f32 %v403, %v419
    %v428 = vmul.f32 %v404, %v420
    %v429 = vmul.f32 %v405, %v421
    %v430 = vmul.f32 %v406, %v422
    %v431 = vmul.f32 %v407, %v423
    %v432 = vmul.f32 %v408, %v424
    %v433 = vmul.f32 %v409, %v425
    %v434 = vmul.f32 %v343, 0.5
    %v435 = vmul.f32 %v345, 0.5
    %v436 = vmul.f32 %v386, 0.5
    %v437 = vmul.f32 %v388, 0.5
    %v438 = vmul.f32 %v347, 0.5
    %v439 = vmul.f32 %v349, 0.5
    %v440 = vmul.f32 %v390, 0.5
    %v441 = vmul.f32 %v392, 0.5
    %v442 = vtanh.pop %v426
    %v443 = vtanh.pop %v427
    %v444 = vtanh.pop %v428
    %v445 = vtanh.pop %v429
    %v446 = vtanh.pop %v430
    %v447 = vtanh.pop %v431
    %v448 = vtanh.pop %v432
    %v449 = vtanh.pop %v433
    %v450 = vadd.f32 %v442, 1.0
    %v451 = vadd.f32 %v443, 1.0
    %v452 = vadd.f32 %v444, 1.0
    %v453 = vadd.f32 %v445, 1.0
    %v454 = vadd.f32 %v446, 1.0
    %v455 = vadd.f32 %v447, 1.0
    %v456 = vadd.f32 %v448, 1.0
    %v457 = vadd.f32 %v449, 1.0
    %v458 = vmul.f32 %v434, %v450
    %v459 = vmul.f32 %v435, %v451
    %v460 = vmul.f32 %v436, %v452
    %v461 = vmul.f32 %v437, %v453
    %v462 = vmul.f32 %v438, %v454
    %v463 = vmul.f32 %v439, %v455
    %v464 = vmul.f32 %v440, %v456
    %v465 = vmul.f32 %v441, %v457
    %v466 = vld [vmem:[#allocation2] sm:$0xff]
    %v467 = vld [vmem:[#allocation2 + $0x8] sm:$0xff]
    %v468 = vpack.c.bf16 %v462, %v458
    %v469 = vpack.c.bf16 %v463, %v459
    %v470 = vpack.c.bf16 %v464, %v460
    %v471 = vpack.c.bf16 %v465, %v461
    %v472 = vld [vmem:[#allocation8] sm:$0xf]
    %v473 = vld [vmem:[#allocation8 + $0x4] sm:$0xf]
    %v474 = vld [vmem:[#allocation8 + $0x8] sm:$0xf]
    %v475 = vld [vmem:[#allocation8 + $0xc] sm:$0xf]
    %v476 = vld [vmem:[#allocation8 + $0x10] sm:$0xf]
    %v477 = vld [vmem:[#allocation8 + $0x14] sm:$0xf]
    %v478 = vld [vmem:[#allocation8 + $0x18] sm:$0xf]
    %v479 = vld [vmem:[#allocation8 + $0x1c] sm:$0xf]
    %v480 = vld [vmem:[#allocation8 + $0x20] sm:$0xf]
    %v481 = vld [vmem:[#allocation8 + $0x24] sm:$0xf]
    %v482 = vld [vmem:[#allocation8 + $0x28] sm:$0xf]
    %v483 = vld [vmem:[#allocation8 + $0x2c] sm:$0xf]
    %v484 = vld [vmem:[#allocation8 + $0x30] sm:$0xf]
    %v485 = vld [vmem:[#allocation8 + $0x34] sm:$0xf]
    %v486 = vld [vmem:[#allocation8 + $0x38] sm:$0xf]
    %v487 = vld [vmem:[#allocation8 + $0x3c] sm:$0xf]
    %v488 = vld [vmem:[#allocation8 + $0x40] sm:$0xf]
    %v489 = vld [vmem:[#allocation8 + $0x44] sm:$0xf]
    %v490 = vld [vmem:[#allocation8 + $0x48] sm:$0xf]
    %v491 = vld [vmem:[#allocation8 + $0x4c] sm:$0xf]
    %v492 = vld [vmem:[#allocation8 + $0x50] sm:$0xf]
    %v493 = vld [vmem:[#allocation8 + $0x54] sm:$0xf]
    %v494 = vld [vmem:[#allocation8 + $0x58] sm:$0xf]
    %v495 = vld [vmem:[#allocation8 + $0x5c] sm:$0xf]
    %v496 = vld [vmem:[#allocation8 + $0x60] sm:$0xf]
    %v497 = vld [vmem:[#allocation8 + $0x64] sm:$0xf]
    %v498 = vld [vmem:[#allocation8 + $0x68] sm:$0xf]
    %v499 = vld [vmem:[#allocation8 + $0x6c] sm:$0xf]
    %v500 = vld [vmem:[#allocation8 + $0x70] sm:$0xf]
    %v501 = vld [vmem:[#allocation8 + $0x74] sm:$0xf]
    %v502 = vld [vmem:[#allocation8 + $0x78] sm:$0xf]
    %v503 = vld [vmem:[#allocation8 + $0x7c] sm:$0xf]
    %v504 = vld [vmem:[#allocation8 + $0x80] sm:$0xf]
    %v505 = vld [vmem:[#allocation8 + $0x84] sm:$0xf]
    %v506 = vld [vmem:[#allocation8 + $0x88] sm:$0xf]
    %v507 = vld [vmem:[#allocation8 + $0x8c] sm:$0xf]
    %v508 = vld [vmem:[#allocation8 + $0x90] sm:$0xf]
    %v509 = vld [vmem:[#allocation8 + $0x94] sm:$0xf]
    %v510 = vld [vmem:[#allocation8 + $0x98] sm:$0xf]
    %v511 = vld [vmem:[#allocation8 + $0x9c] sm:$0xf]
    %v512 = vld [vmem:[#allocation8 + $0xa0] sm:$0xf]
    %v513 = vld [vmem:[#allocation8 + $0xa4] sm:$0xf]
    %v514 = vld [vmem:[#allocation8 + $0xa8] sm:$0xf]
    %v515 = vld [vmem:[#allocation8 + $0xac] sm:$0xf]
    %v516 = vld [vmem:[#allocation8 + $0xb0] sm:$0xf]
    %v517 = vld [vmem:[#allocation8 + $0xb4] sm:$0xf]
    %v518 = vld [vmem:[#allocation8 + $0xb8] sm:$0xf]
    %v519 = vld [vmem:[#allocation8 + $0xbc] sm:$0xf]
    %v520 = vld [vmem:[#allocation8 + $0xc0] sm:$0xf]
    %v521 = vld [vmem:[#allocation8 + $0xc4] sm:$0xf]
    %v522 = vld [vmem:[#allocation8 + $0xc8] sm:$0xf]
    %v523 = vld [vmem:[#allocation8 + $0xcc] sm:$0xf]
    %v524 = vld [vmem:[#allocation8 + $0xd0] sm:$0xf]
    %v525 = vld [vmem:[#allocation8 + $0xd4] sm:$0xf]
    %v526 = vld [vmem:[#allocation8 + $0xd8] sm:$0xf]
    %v527 = vld [vmem:[#allocation8 + $0xdc] sm:$0xf]
    %v528 = vld [vmem:[#allocation8 + $0xe0] sm:$0xf]
    %v529 = vld [vmem:[#allocation8 + $0xe4] sm:$0xf]
    %v530 = vld [vmem:[#allocation8 + $0xe8] sm:$0xf]
    %v531 = vld [vmem:[#allocation8 + $0xec] sm:$0xf]
    %v532 = vld [vmem:[#allocation8 + $0xf0] sm:$0xf]
    %v533 = vld [vmem:[#allocation8 + $0xf4] sm:$0xf]
    %v534 = vld [vmem:[#allocation8 + $0xf8] sm:$0xf]
    %v535 = vld [vmem:[#allocation8 + $0xfc] sm:$0xf]
    %v600 = vunpack.c.l.b16 %v472
    %v601 = vunpack.c.l.b16 %v473
    %v602 = vunpack.c.l.b16 %v474
    %v603 = vunpack.c.l.b16 %v475
    %v604 = vunpack.c.l.b16 %v476
    %v605 = vunpack.c.l.b16 %v477
    %v606 = vunpack.c.l.b16 %v478
    %v607 = vunpack.c.l.b16 %v479
    %v608 = vunpack.c.l.b16 %v480
    %v609 = vunpack.c.l.b16 %v481
    %v610 = vunpack.c.l.b16 %v482
    %v611 = vunpack.c.l.b16 %v483
    %v612 = vunpack.c.l.b16 %v484
    %v613 = vunpack.c.l.b16 %v485
    %v614 = vunpack.c.l.b16 %v486
    %v615 = vunpack.c.l.b16 %v487
    %v616 = vunpack.c.l.b16 %v488
    %v617 = vunpack.c.l.b16 %v489
    %v618 = vunpack.c.l.b16 %v490
    %v619 = vunpack.c.l.b16 %v491
    %v620 = vunpack.c.l.b16 %v492
    %v621 = vunpack.c.l.b16 %v493
    %v622 = vunpack.c.l.b16 %v494
    %v623 = vunpack.c.l.b16 %v495
    %v624 = vunpack.c.l.b16 %v496
    %v625 = vunpack.c.l.b16 %v497
    %v626 = vunpack.c.l.b16 %v498
    %v627 = vunpack.c.l.b16 %v499
    %v628 = vunpack.c.l.b16 %v500
    %v629 = vunpack.c.l.b16 %v501
    %v630 = vunpack.c.l.b16 %v502
    %v631 = vunpack.c.l.b16 %v503
    %v632 = vunpack.c.l.b16 %v504
    %v633 = vunpack.c.l.b16 %v505
    %v634 = vunpack.c.l.b16 %v506
    %v635 = vunpack.c.l.b16 %v507
    %v636 = vunpack.c.l.b16 %v508
    %v637 = vunpack.c.l.b16 %v509
    %v638 = vunpack.c.l.b16 %v510
    %v639 = vunpack.c.l.b16 %v511
    %v640 = vunpack.c.l.b16 %v512
    %v641 = vunpack.c.l.b16 %v513
    %v642 = vunpack.c.l.b16 %v514
    %v643 = vunpack.c.l.b16 %v515
    %v644 = vunpack.c.l.b16 %v516
    %v645 = vunpack.c.l.b16 %v517
    %v646 = vunpack.c.l.b16 %v518
    %v647 = vunpack.c.l.b16 %v519
    %v648 = vunpack.c.l.b16 %v520
    %v649 = vunpack.c.l.b16 %v521
    %v650 = vunpack.c.l.b16 %v522
    %v651 = vunpack.c.l.b16 %v523
    %v652 = vunpack.c.l.b16 %v524
    %v653 = vunpack.c.l.b16 %v525
    %v654 = vunpack.c.l.b16 %v526
    %v655 = vunpack.c.l.b16 %v527
    %v656 = vunpack.c.l.b16 %v528
    %v657 = vunpack.c.l.b16 %v529
    %v658 = vunpack.c.l.b16 %v530
    %v659 = vunpack.c.l.b16 %v531
    %v660 = vunpack.c.l.b16 %v532
    %v661 = vunpack.c.l.b16 %v533
    %v662 = vunpack.c.l.b16 %v534
    %v663 = vunpack.c.l.b16 %v535
    %v664 = vpack.c.b16 %v601, %v600
    %v665 = vpack.c.b16 %v603, %v602
    %v666 = vpack.c.b16 %v605, %v604
    %v667 = vpack.c.b16 %v607, %v606
    %v668 = vpack.c.b16 %v609, %v608
    %v669 = vpack.c.b16 %v611, %v610
    %v670 = vpack.c.b16 %v613, %v612
    %v671 = vpack.c.b16 %v615, %v614
    %v672 = vpack.c.b16 %v617, %v616
    %v673 = vpack.c.b16 %v619, %v618
    %v674 = vpack.c.b16 %v621, %v620
    %v675 = vpack.c.b16 %v623, %v622
    %v676 = vpack.c.b16 %v625, %v624
    %v677 = vpack.c.b16 %v627, %v626
    %v678 = vpack.c.b16 %v629, %v628
    %v679 = vpack.c.b16 %v631, %v630
    %v680 = vpack.c.b16 %v633, %v632
    %v681 = vpack.c.b16 %v635, %v634
    %v682 = vpack.c.b16 %v637, %v636
    %v683 = vpack.c.b16 %v639, %v638
    %v684 = vpack.c.b16 %v641, %v640
    %v685 = vpack.c.b16 %v643, %v642
    %v686 = vpack.c.b16 %v645, %v644
    %v687 = vpack.c.b16 %v647, %v646
    %v688 = vpack.c.b16 %v649, %v648
    %v689 = vpack.c.b16 %v651, %v650
    %v690 = vpack.c.b16 %v653, %v652
    %v691 = vpack.c.b16 %v655, %v654
    %v692 = vpack.c.b16 %v657, %v656
    %v693 = vpack.c.b16 %v659, %v658
    %v694 = vpack.c.b16 %v661, %v660
    %v695 = vpack.c.b16 %v663, %v662
    %728 = vmatprep.subr.bf16.mxu0 0
    %729 = vmatpush1.bf16.msra.mxu0 %v664
    %730 = vmatprep.subr.bf16.mxu0 0
    %731 = vmatpush1.bf16.msra.mxu0 %v665
    %732 = vmatprep.subr.bf16.mxu0 0
    %733 = vmatpush1.bf16.msra.mxu0 %v666
    %734 = vmatprep.subr.bf16.mxu0 0
    %735 = vmatpush1.bf16.msra.mxu0 %v667
    %736 = vmatprep.subr.bf16.mxu0 0
    %737 = vmatpush1.bf16.msra.mxu0 %v668
    %738 = vmatprep.subr.bf16.mxu0 0
    %739 = vmatpush1.bf16.msra.mxu0 %v669
    %740 = vmatprep.subr.bf16.mxu0 0
    %741 = vmatpush1.bf16.msra.mxu0 %v670
    %742 = vmatprep.subr.bf16.mxu0 0
    %743 = vmatpush1.bf16.msra.mxu0 %v671
    %744 = vmatprep.subr.bf16.mxu0 0
    %745 = vmatpush1.bf16.msra.mxu0 %v672
    %746 = vmatprep.subr.bf16.mxu0 0
    %747 = vmatpush1.bf16.msra.mxu0 %v673
    %748 = vmatprep.subr.bf16.mxu0 0
    %749 = vmatpush1.bf16.msra.mxu0 %v674
    %750 = vmatprep.subr.bf16.mxu0 0
    %751 = vmatpush1.bf16.msra.mxu0 %v675
    %752 = vmatprep.subr.bf16.mxu0 0
    %753 = vmatpush1.bf16.msra.mxu0 %v676
    %754 = vmatprep.subr.bf16.mxu0 0
    %755 = vmatpush1.bf16.msra.mxu0 %v677
    %756 = vmatprep.subr.bf16.mxu0 0
    %757 = vmatpush1.bf16.msra.mxu0 %v678
    %758 = vmatprep.subr.bf16.mxu0 0
    %759 = vmatpush1.bf16.msra.mxu0 %v679
    %760 = vmatprep.mubr.bf16.mxu0 %v469
    %761 = vmatmul.mubr.bf16.gmra.mrb[0].mxu0 %v468
    %v762 = vpop.f32.mrb[0].mxu0
    %v763 = vadd.f32 0.0, %v762
    %v764 = vpop.f32.mrb[0].mxu0
    %v765 = vpop.f32.mrb[0].mxu0
    %v766 = vadd.f32 0.0, %v765
    %v767 = vpop.f32.mrb[0].mxu0
    %768 = vdwg.mxu0
    %769 = vmatprep.subr.bf16.mxu0 0
    %770 = vmatpush1.bf16.msra.mxu0 %v680
    %771 = vmatprep.subr.bf16.mxu0 0
    %772 = vmatpush1.bf16.msra.mxu0 %v681
    %773 = vmatprep.subr.bf16.mxu0 0
    %774 = vmatpush1.bf16.msra.mxu0 %v682
    %775 = vmatprep.subr.bf16.mxu0 0
    %776 = vmatpush1.bf16.msra.mxu0 %v683
    %777 = vmatprep.subr.bf16.mxu0 0
    %778 = vmatpush1.bf16.msra.mxu0 %v684
    %779 = vmatprep.subr.bf16.mxu0 0
    %780 = vmatpush1.bf16.msra.mxu0 %v685
    %781 = vmatprep.subr.bf16.mxu0 0
    %782 = vmatpush1.bf16.msra.mxu0 %v686
    %783 = vmatprep.subr.bf16.mxu0 0
    %784 = vmatpush1.bf16.msra.mxu0 %v687
    %785 = vmatprep.subr.bf16.mxu0 0
    %786 = vmatpush1.bf16.msra.mxu0 %v688
    %787 = vmatprep.subr.bf16.mxu0 0
    %788 = vmatpush1.bf16.msra.mxu0 %v689
    %789 = vmatprep.subr.bf16.mxu0 0
    %790 = vmatpush1.bf16.msra.mxu0 %v690
    %791 = vmatprep.subr.bf16.mxu0 0
    %792 = vmatpush1.bf16.msra.mxu0 %v691
    %793 = vmatprep.subr.bf16.mxu0 0
    %794 = vmatpush1.bf16.msra.mxu0 %v692
    %795 = vmatprep.subr.bf16.mxu0 0
    %796 = vmatpush1.bf16.msra.mxu0 %v693
    %797 = vmatprep.subr.bf16.mxu0 0
    %798 = vmatpush1.bf16.msra.mxu0 %v694
    %799 = vmatprep.subr.bf16.mxu0 0
    %800 = vmatpush1.bf16.msra.mxu0 %v695
    %801 = vmatprep.mubr.bf16.mxu0 %v471
    %802 = vmatmul.mubr.bf16.gmra.mrb[0].mxu0 %v470
    %v803 = vpop.f32.mrb[0].mxu0
    %v804 = vadd.f32 %v763, %v803
    %v805 = vpop.f32.mrb[0].mxu0
    %v806 = vpop.f32.mrb[0].mxu0
    %v807 = vadd.f32 %v766, %v806
    %v808 = vpop.f32.mrb[0].mxu0
    %809 = vdwg.mxu0
    %v810 = vadd.f32 %v466, %v804
    %v811 = vadd.f32 %v467, %v807
    %812 = vst [vmem:[#allocation2] sm:$0xff] %v810
    %813 = vst [vmem:[#allocation2 + $0x8] sm:$0xff] %v811
    // Predicated region
    $region38: #{tpu_custom_call.1} parent=1 // pred_check
      %p814 = pneg %p63
    $region39: #{tpu_custom_call.1} parent=1 // pred_check_branch
      %816 = sbr.rel (%p814) target = $region41
    $region40: #{tpu_custom_call.1} parent=1 // pred_region
      %v817 = vld [vmem:[#allocation2] sm:$0xff]
      %v818 = vld [vmem:[#allocation2 + $0x8] sm:$0xff]
      %v819 = vld [vmem:[%s4] sm:$0x1]
      %v820 = vunpack.c.l.bf16 %v819
      %v821 = vlaneseq
      %v822 = vshrl.u32 %v821, 7
      %v823 = vsub.s32 0, %v822
      %v824 = vrot.slane %v820, %v823
      %v825 = vadd.f32 %v817, %v824
      %v826 = vadd.f32 %v818, %v824
      %v827 = vpack.c.bf16 %v826, %v825
      %v829 = vunpack.c.l.b16 %v827
      %v830 = vunpack.c.h.b16 %v827
      %v831 = vpack.c.b16 %v829, %v829
      %v832 = vpack.c.b16 %v830, %v830
      %835 = vst [vmem:[#allocation9] sm:$0xf] %v831
      %836 = vst [vmem:[#allocation9 + $0x4] sm:$0xf] %v832
    $region41: #{tpu_custom_call.1} parent=1 // pred_fallthru
      _
    // Predicated region
    $region42: #{tpu_custom_call.1} parent=1 // pred_check
      _
    $region43: #{tpu_custom_call.1} parent=1 // pred_check_branch
      %838 = sbr.rel (0) target = $region45
    $region44: #{tpu_custom_call.1} parent=1 // pred_region
      %s840 = ssub.s32 128, 128
      %841 = vsyncadd [#allocation5], %s840
      %s842 = sshll.u32 [#allocation9], 4
      %s843 = int_to_ptr.vmem [resolvable:$true] %s842
      %848 = dma.vmem_to_hbm [thread:$0]  %s843, 128, %s5, [#allocation5], 64, 64, 4
    $region45: #{tpu_custom_call.1} parent=1 // pred_fallthru
      _
    // Predicated region
    $region46: #{tpu_custom_call.1} parent=1 // pred_check
      _
    $region47: #{tpu_custom_call.1} parent=1 // pred_check_branch
      %850 = sbr.rel (0) target = $region49
    $region48: #{tpu_custom_call.1} parent=1 // pred_region
      %851 = dma.done [#allocation5], 128
    $region49: #{tpu_custom_call.1} parent=1 // pred_fallthru
      _
    %852 = vsyncpa [#allocation4], 1
    %853 = vsyncpa [#allocation7], 1
    %854 = vsyncpa [#allocation5], 1

</llo_original>
